<compile_context>
chip_gen: v7x
topology: tpu7x:2x2x1
jax: 0.10.0
libtpu: 0.0.40
codegen_flags: <defaults>
</compile_context>

<pallas_src>
import functools
import re
from typing import NamedTuple

import jax
import jax.numpy as jnp
from jax.experimental import pallas as pl
from jax.experimental.pallas import tpu as pltpu


# ----------------------------------------------------------------------------
# small helpers
# ----------------------------------------------------------------------------
def _round_up(v, m):
    return ((v + m - 1) // m) * m


def _cdiv(a, b):
    return (a + b - 1) // b


def _sublane_multiple(dtype):
    # packed-sublane granularity: f32 -> 8, bf16/f16 -> 16, int8/fp8 -> 32
    return {4: 8, 2: 16, 1: 32}.get(jnp.dtype(dtype).itemsize, 8)


@functools.lru_cache(maxsize=1)
def _tpu_generation():
    """Best-effort TPU generation (5, 6, 7, ...) or None if undetectable."""
    try:
        kind = str(jax.devices()[0].device_kind)
    except Exception:
        return None
    m = re.search(r"(\d+)", kind)
    return int(m.group(1)) if m else None


def _device_config(compute_dtype):
    """Generation-aware tile caps and scoped-VMEM budget."""
    gen = _tpu_generation()
    itemsize = jnp.dtype(compute_dtype).itemsize
    tk_cap = 1024 if itemsize <= 2 else 512            # always a multiple of 128
    if gen is not None and gen >= 7:
        # v7x: 64 MiB VMEM per TensorCore -> smaller per-step footprint.
        tm_cap, tn_cap, vmem_limit = 512, 512, 48 << 20
    elif gen is not None and gen >= 5:
        # v5e / v6e: 128 MiB physical VMEM; raise the scoped default and use
        # bigger output tiles to amortize grid overhead and W re-reads.
        tm_cap, tn_cap, vmem_limit = 1024, 1024, 96 << 20
    else:
        tm_cap, tn_cap, vmem_limit = 512, 512, None    # conservative fallback
    return gen, tm_cap, tn_cap, tk_cap, vmem_limit


# ----------------------------------------------------------------------------
# kernels
# ----------------------------------------------------------------------------
def _linear_bias_kernel(x_ref, w_ref, b_ref, o_ref):
    # nk == 1 fast path: single MXU matmul, bias fused, one lane-dense store.
    acc = jnp.dot(x_ref[...], w_ref[...], preferred_element_type=jnp.float32)
    o_ref[...] = (acc + b_ref[...].astype(jnp.float32)).astype(o_ref.dtype)


def _linear_bias_acc_kernel(x_ref, w_ref, b_ref, o_ref, *scratch):
    # grid = (i over M tiles, j over N tiles, k over contraction tiles)
    # f32 outputs: the output block (constant block index over k) IS the
    # accumulator; otherwise an f32 VMEM scratch is passed in.
    acc_ref = scratch[0] if scratch else o_ref
    k = pl.program_id(2)
    part = jnp.dot(x_ref[...], w_ref[...], preferred_element_type=jnp.float32)

    @pl.when(k == 0)
    def _():
        acc_ref[...] = part          # assign on step 0 (no zeros fill + RMW)

    @pl.when(k > 0)
    def _():
        acc_ref[...] += part

    @pl.when(k == pl.num_programs(2) - 1)
    def _():
        # bias added exactly once, at finalize — never in the hot loop
        o_ref[...] = (acc_ref[...] + b_ref[...].astype(jnp.float32)).astype(o_ref.dtype)


# ----------------------------------------------------------------------------
# one-time parameter preparation (hoisted out of the per-call forward)
# ----------------------------------------------------------------------------
class PreparedEnsemble(NamedTuple):
    w: jax.Array      # [Din_p, Dout_p] averaged weights, compute dtype, padded
    b: jax.Array      # [1, Dout_p]     averaged bias, f32, padded
    d_in: int
    d_out: int
    din_p: int
    dout_p: int
    tk: int
    nk: int
    tn: int
    nn: int


def prepare_ensemble(w_stack, b_stack, *, compute_dtype=None):
    """Collapse the K sub-models once:  mean_k(xW_k + b_k) = x·mean(W) + mean(b).
    Averaging is done in f32, then cast to the compute dtype and padded to the
    kernel layout.  Call once per parameter set and reuse for every forward."""
    K, D_in, D_out = w_stack.shape
    cdt = jnp.dtype(compute_dtype) if compute_dtype is not None else jnp.dtype(w_stack.dtype)
    gen, _tm_cap, tn_cap, tk_cap, _vmem = _device_config(cdt)

    w_mean = jnp.mean(w_stack.astype(jnp.float32), axis=0).astype(cdt)        # [D_in, D_out]
    b_mean = jnp.mean(b_stack.astype(jnp.float32), axis=0).reshape(1, D_out)  # [1, D_out] f32

    # contraction tiling: full extent when small, otherwise fixed tk + zero pad
    if D_in <= tk_cap:
        tk, din_p = D_in, D_in
    else:
        tk = tk_cap
        din_p = _round_up(D_in, tk)
    nk = din_p // tk

    # output tiling: lane-dense (multiples of 128), minimal padding
    dout_128 = _round_up(D_out, 128)
    nn = _cdiv(dout_128, tn_cap)
    if gen is not None and gen >= 7 and nn == 1 and dout_128 >= 256:
        nn = 2                           # v7x: give both TensorCores an N tile
    tn = _cdiv(dout_128 // 128, nn) * 128
    dout_p = nn * tn

    w_p = w_mean
    if din_p != D_in or dout_p != D_out:
        w_p = jnp.pad(w_mean, ((0, din_p - D_in), (0, dout_p - D_out)))
    b_p = b_mean if dout_p == D_out else jnp.pad(b_mean, ((0, 0), (0, dout_p - D_out)))

    return PreparedEnsemble(w=w_p, b=b_p, d_in=D_in, d_out=D_out,
                            din_p=din_p, dout_p=dout_p, tk=tk, nk=nk, tn=tn, nn=nn)


# ----------------------------------------------------------------------------
# steady-state forward
# ----------------------------------------------------------------------------
def ensemble_forward(x, prepared: PreparedEnsemble, *, out_dtype=None):
    """x: [B, D_in] -> [B, D_out] = mean_k(x @ W_k + b_k)."""
    B, D_in = x.shape
    assert D_in == prepared.d_in, "x feature dim must match prepared weights"
    out_dtype = jnp.dtype(out_dtype) if out_dtype is not None else jnp.dtype(x.dtype)
    cdt = jnp.dtype(prepared.w.dtype)
    gen, tm_cap, _tn_cap, _tk_cap, vmem_limit = _device_config(cdt)
    sub = _sublane_multiple(cdt)

    tk, nk, tn, nn = prepared.tk, prepared.nk, prepared.tn, prepared.nn
    din_p, dout_p = prepared.din_p, prepared.dout_p

    # row tiling: minimize padding, respect the packed-sublane granularity
    nm = _cdiv(B, tm_cap)
    tm = _round_up(_cdiv(B, nm), sub)
    if gen is not None and gen >= 7 and nm == 1 and nn == 1 and B > sub:
        nm = 2                           # v7x: narrow D_out -> split rows instead
        tm = _round_up(_cdiv(B, nm), sub)
    rows_p = nm * tm

    x_c = x if x.dtype == cdt else x.astype(cdt)
    if rows_p != B or din_p != D_in:     # skip pad round-trip when aligned
        x_c = jnp.pad(x_c, ((0, rows_p - B), (0, din_p - D_in)))

    # f32 output doubles as the accumulator; otherwise allocate an f32 scratch.
    use_scratch = (nk > 1) and (out_dtype != jnp.dtype(jnp.float32))
    scratch_shapes = [pltpu.VMEM((tm, tn), jnp.float32)] if use_scratch else []

    itemsize = cdt.itemsize
    cost = pl.CostEstimate(
        flops=2 * rows_p * din_p * dout_p,
        transcendentals=0,
        bytes_accessed=(rows_p * din_p * itemsize          # x
                        + din_p * dout_p * itemsize        # averaged W
                        + dout_p * 4                       # averaged bias (f32)
                        + rows_p * dout_p * out_dtype.itemsize),  # output
    )

    if nk == 1:
        grid = (nm, nn)
        in_specs = [
            pl.BlockSpec((tm, tk), lambda i, j: (i, 0)),   # x tile
            pl.BlockSpec((tk, tn), lambda i, j: (0, j)),   # averaged W tile
            pl.BlockSpec((1, tn), lambda i, j: (0, j)),    # averaged bias
        ]
        out_spec = pl.BlockSpec((tm, tn), lambda i, j: (i, j))
        kernel = _linear_bias_kernel
        dim_sem = ("parallel", "parallel")
        scratch_shapes = []
    else:
        grid = (nm, nn, nk)                                # reduction axis LAST
        in_specs = [
            pl.BlockSpec((tm, tk), lambda i, j, k: (i, k)),
            pl.BlockSpec((tk, tn), lambda i, j, k: (k, j)),
            pl.BlockSpec((1, tn), lambda i, j, k: (0, j)),
        ]
        out_spec = pl.BlockSpec((tm, tn), lambda i, j, k: (i, j))
        kernel = _linear_bias_acc_kernel
        dim_sem = ("parallel", "parallel", "arbitrary")

    cp_kwargs = {"dimension_semantics": dim_sem}
    if vmem_limit is not None:
        cp_kwargs["vmem_limit_bytes"] = vmem_limit

    out_p = pl.pallas_call(
        kernel,
        out_shape=jax.ShapeDtypeStruct((rows_p, dout_p), out_dtype),
        grid_spec=pltpu.PrefetchScalarGridSpec(
            num_scalar_prefetch=0,
            grid=grid,
            in_specs=in_specs,
            out_specs=out_spec,
            scratch_shapes=scratch_shapes,
        ),
        compiler_params=pltpu.CompilerParams(**cp_kwargs),
        cost_estimate=cost,
    )(x_c, prepared.w, prepared.b)

    if rows_p != B or dout_p != prepared.d_out:            # skip slice when aligned
        out_p = out_p[:B, :prepared.d_out]
    return out_p


def ensemble_reference(x, w_stack, b_stack):
    # pure-JAX match of the PyTorch Ensemble: sum_k(model_k(x)) / K
    outs = jnp.einsum("bd,kdo->kbo", x, w_stack) + b_stack
    return jnp.sum(outs, axis=0) / w_stack.shape[0]


if __name__ == "__main__":
    # ---- test 1: small shapes implied by the module (nk == 1 fast path) ----
    B, D_in, D_out, K = 8, 32, 16, 3
    kx, kw, kb = jax.random.split(jax.random.PRNGKey(0), 3)
    x = jax.random.normal(kx, (B, D_in), dtype=jnp.float32)
    w_stack = jax.random.normal(kw, (K, D_in, D_out), dtype=jnp.float32) * 0.05
    b_stack = jax.random.normal(kb, (K, 1, D_out), dtype=jnp.float32) * 0.01

    prep = prepare_ensemble(w_stack, b_stack)          # one-time preparation
    out = jax.block_until_ready(ensemble_forward(x, prep))
    ref = ensemble_reference(x, w_stack, b_stack)
    assert out.shape == (B, D_out)
    assert jnp.allclose(out, ref, atol=1e-4, rtol=1e-4), "mismatch vs reference (test 1)"

    # ---- test 2: exercise the tiled-contraction (nk > 1) + padding paths ----
    B2, D_in2, D_out2, K2 = 20, 1100, 200, 2
    kx2, kw2, kb2 = jax.random.split(jax.random.PRNGKey(1), 3)
    x2 = jax.random.normal(kx2, (B2, D_in2), dtype=jnp.float32)
    w2 = jax.random.normal(kw2, (K2, D_in2, D_out2), dtype=jnp.float32) * 0.05
    b2 = jax.random.normal(kb2, (K2, 1, D_out2), dtype=jnp.float32) * 0.01

    prep2 = prepare_ensemble(w2, b2)
    out2 = jax.block_until_ready(ensemble_forward(x2, prep2))
    ref2 = ensemble_reference(x2, w2, b2)
    assert out2.shape == (B2, D_out2)
    assert jnp.allclose(out2, ref2, atol=1e-4, rtol=1e-4), "mismatch vs reference (test 2)"

    print("KERNEL_OK")
</pallas_src>

<mosaic_0001>
module attributes {stable_mosaic.version = 11 : i64} {
  func.func @_linear_bias_kernel(%arg0: i32, %arg1: i32, %arg2: memref<8x32xf32, #tpu.memory_space<vmem>>, %arg3: memref<32x128xf32, #tpu.memory_space<vmem>>, %arg4: memref<1x128xf32, #tpu.memory_space<vmem>>, %arg5: memref<8x128xf32, #tpu.memory_space<vmem>>) attributes {dimension_semantics = [#tpu.dimension_semantics<parallel>, #tpu.dimension_semantics<parallel>], iteration_bounds = array<i64: 1, 1>, scalar_prefetch = 0 : i64, scratch_operands = 0 : i64, tpu.core_type = #tpu.core_type<tc>, window_params = [{transform_indices = @transform_0, window_bounds = array<i64: 8, 32>}, {transform_indices = @transform_1, window_bounds = array<i64: 32, 128>}, {transform_indices = @transform_2, window_bounds = array<i64: 1, 128>}, {transform_indices = @transform_3, window_bounds = array<i64: 8, 128>}]} {
    %c0 = arith.constant 0 : index
    %c0_0 = arith.constant 0 : index
    %0 = vector.load %arg2[%c0, %c0_0] : memref<8x32xf32, #tpu.memory_space<vmem>>, vector<8x32xf32>
    %c0_1 = arith.constant 0 : index
    %c0_2 = arith.constant 0 : index
    %1 = vector.load %arg3[%c0_1, %c0_2] : memref<32x128xf32, #tpu.memory_space<vmem>>, vector<32x128xf32>
    %cst = arith.constant dense<0.000000e+00> : vector<8x128xf32>
    %2 = tpu.matmul %0, %1, %cst {dimension_numbers = #tpu.dot_dimension_numbers<[1], [0], [0], [1], [0, 0, 1, 1], [], []>} : vector<8x32xf32>, vector<32x128xf32>, vector<8x128xf32> -> vector<8x128xf32>
    %c0_3 = arith.constant 0 : index
    %c0_4 = arith.constant 0 : index
    %3 = vector.load %arg4[%c0_3, %c0_4] : memref<1x128xf32, #tpu.memory_space<vmem>>, vector<1x128xf32>
    %4 = vector.broadcast %3 : vector<1x128xf32> to vector<8x128xf32>
    %5 = arith.addf %2, %4 : vector<8x128xf32>
    %c0_5 = arith.constant 0 : index
    %c0_6 = arith.constant 0 : index
    %6 = vector.load %arg5[%c0_5, %c0_6] : memref<8x128xf32, #tpu.memory_space<vmem>>, vector<8x128xf32>
    tpu.vector_store %arg5[%c0_5, %c0_6], %5 {strides = array<i32>} : memref<8x128xf32, #tpu.memory_space<vmem>>, vector<8x128xf32>,
    return
  }
  func.func @transform_0(%arg0: i32, %arg1: i32) -> (i32, i32) {
    %c0_i32 = arith.constant 0 : i32
    %c0_i32_0 = arith.constant 0 : i32
    return %arg0, %c0_i32 : i32, i32
  }
  func.func @transform_1(%arg0: i32, %arg1: i32) -> (i32, i32) {
    %c0_i32 = arith.constant 0 : i32
    %c0_i32_0 = arith.constant 0 : i32
    return %c0_i32, %arg1 : i32, i32
  }
  func.func @transform_2(%arg0: i32, %arg1: i32) -> (i32, i32) {
    %c0_i32 = arith.constant 0 : i32
    %c0_i32_0 = arith.constant 0 : i32
    return %c0_i32, %arg1 : i32, i32
  }
  func.func @transform_3(%arg0: i32, %arg1: i32) -> (i32, i32) {
    %c0_i32 = arith.constant 0 : i32
    return %arg0, %arg1 : i32, i32
  }
}

</mosaic_0001>

<llo_original>
// kernel: tpu_custom_call.1
$region0: #{tpu_custom_call.1}
  #allocation0 [shape = 'u32[]', space=smem, size = 0x4, offset = 0x4, fixed_abs, tag = 'smem constant byte address 0x4 - core index']
  #allocation1 [shape = 'u32[144,128]{1,0:T(1,128)}', space=vmem, size = 0x12000, scoped, tag = 'internal scratch']
  %s0 = inlined_call_operand.hbm [shape: f32[8,32], index: 0, kind: input, shape index: {}]
  %s1 = inlined_call_operand.hbm [shape: f32[32,128], index: 1, kind: input, shape index: {}]
  %s2 = inlined_call_operand.vmem [shape: f32[1,128], index: 2, kind: input, shape index: {}]
  %s3 = inlined_call_operand.hbm [shape: f32[8,128], index: 3, kind: output, shape index: {}]
  %s4 = sld [smem:[#allocation0]]
  $region30: #{tpu_custom_call.1} parent=0
    _
  %s6 = ssub.s32 1, %s4
  %s7 = scalar_select 0, %s6, %s4
  $region1: #{tpu_custom_call.1} parent=0
    #allocation2 [shape = 'u8[4096]{0}', space=vmem, size = 0x1000, scoped, tag = 'input window, operand 0, single buffered']
    #allocation3 [shape = 's32[1]{0}', space=sflag, size = 0x4, scoped, tag = 'scoped memory for tpu_custom_call.1']
    #allocation4 [shape = 's32[1]{0}', space=sflag, size = 0x4, scoped, tag = 'scoped memory for tpu_custom_call.1']
    #allocation5 [shape = 'u8[16384]{0}', space=vmem, size = 0x4000, scoped, tag = 'input window, operand 1, single buffered']
    #allocation6 [shape = 's32[1]{0}', space=sflag, size = 0x4, scoped, tag = 'scoped memory for tpu_custom_call.1']
    #allocation7 [shape = 'u8[4096]{0}', space=vmem, size = 0x1000, scoped, tag = 'output window, operand 0, single buffered']
    %8 = vsyncpa [#allocation3], 0
    %9 = vsyncpa [#allocation6], 0
    %10 = vsyncpa [#allocation4], 0
    // Predicated region
    $region2: #{tpu_custom_call.1} parent=1 // pred_check
      _
    $region3: #{tpu_custom_call.1} parent=1 // pred_check_branch
      %12 = sbr.rel (0) target = $region5
    $region4: #{tpu_custom_call.1} parent=1 // pred_region
      %s14 = ssub.s32 128, 128
      %15 = vsyncadd [#allocation3], %s14
      %s17 = sshll.u32 [#allocation2], 4
      %s18 = int_to_ptr.vmem [resolvable:$true] %s17
      %20 = dma.hbm_to_vmem [thread:$0]  %s0, 128, %s18, [#allocation3]
    $region5: #{tpu_custom_call.1} parent=1 // pred_fallthru
      _
    // Predicated region
    $region6: #{tpu_custom_call.1} parent=1 // pred_check
      _
    $region7: #{tpu_custom_call.1} parent=1 // pred_check_branch
      %22 = sbr.rel (0) target = $region9
    $region8: #{tpu_custom_call.1} parent=1 // pred_region
      %s24 = ssub.s32 512, 512
      %25 = vsyncadd [#allocation6], %s24
      %s26 = sshll.u32 [#allocation5], 4
      %s27 = int_to_ptr.vmem [resolvable:$true] %s26
      %32 = dma.hbm_to_vmem [thread:$0]  %s1, 512, %s27, [#allocation6], 128, 128, 8
    $region9: #{tpu_custom_call.1} parent=1 // pred_fallthru
      _
    // Predicated region
    $region10: #{tpu_custom_call.1} parent=1 // pred_check
      _
    $region11: #{tpu_custom_call.1} parent=1 // pred_check_branch
      %34 = sbr.rel (0) target = $region13
    $region12: #{tpu_custom_call.1} parent=1 // pred_region
      _
    $region13: #{tpu_custom_call.1} parent=1 // pred_fallthru
      _
    // Predicated region
    $region14: #{tpu_custom_call.1} parent=1 // pred_check
      _
    $region15: #{tpu_custom_call.1} parent=1 // pred_check_branch
      %36 = sbr.rel (0) target = $region17
    $region16: #{tpu_custom_call.1} parent=1 // pred_region
      %37 = dma.done [#allocation3], 128
    $region17: #{tpu_custom_call.1} parent=1 // pred_fallthru
      _
    // Predicated region
    $region18: #{tpu_custom_call.1} parent=1 // pred_check
      _
    $region19: #{tpu_custom_call.1} parent=1 // pred_check_branch
      %39 = sbr.rel (0) target = $region21
    $region20: #{tpu_custom_call.1} parent=1 // pred_region
      %40 = dma.done [#allocation6], 512
    $region21: #{tpu_custom_call.1} parent=1 // pred_fallthru
      _
    %v41 = vld [vmem:[#allocation2] sm:$0xff]
    %v42 = vld [vmem:[#allocation5] sm:$0xff]
    %v43 = vld [vmem:[#allocation5 + $0x8] sm:$0xff]
    %v44 = vld [vmem:[#allocation5 + $0x10] sm:$0xff]
    %v45 = vld [vmem:[#allocation5 + $0x18] sm:$0xff]
    %v46 = vld [vmem:[%s2] sm:$0x1]
    %v48 = vlaneseq
    %v49 = vshrl.u32 %v48, 7
    %v50 = vsub.s32 0, %v49
    %v51 = vrot.slane %v46, %v50
    %vm53 = vcmask 261120
    %v55 = vsel %vm53, %v41, 0
    %57 = vmatprep.subr.mxu0 0.0
    %58 = vmatpush1.msra.mxu0 %v42
    %59 = vmatprep.subr.mxu0 0.0
    %60 = vmatpush1.msra.mxu0 %v43
    %61 = vmatprep.subr.mxu0 0.0
    %62 = vmatpush1.msra.mxu0 %v44
    %63 = vmatprep.subr.mxu0 0.0
    %64 = vmatpush1.msra.mxu0 %v45
    %65 = vmatprep.subr.mxu0 0.0
    %66 = vmatpush1.msra.mxu0 0.0
    %67 = vmatprep.subr.mxu0 0.0
    %68 = vmatpush1.msra.mxu0 0.0
    %69 = vmatprep.subr.mxu0 0.0
    %70 = vmatpush1.msra.mxu0 0.0
    %71 = vmatprep.subr.mxu0 0.0
    %72 = vmatpush1.msra.mxu0 0.0
    %73 = vmatprep.subr.mxu0 0.0
    %74 = vmatpush1.msra.mxu0 0.0
    %75 = vmatprep.subr.mxu0 0.0
    %76 = vmatpush1.msra.mxu0 0.0
    %77 = vmatprep.subr.mxu0 0.0
    %78 = vmatpush1.msra.mxu0 0.0
    %79 = vmatprep.subr.mxu0 0.0
    %80 = vmatpush1.msra.mxu0 0.0
    %81 = vmatprep.subr.mxu0 0.0
    %82 = vmatpush1.msra.mxu0 0.0
    %83 = vmatprep.subr.mxu0 0.0
    %84 = vmatpush1.msra.mxu0 0.0
    %85 = vmatprep.subr.mxu0 0.0
    %86 = vmatpush1.msra.mxu0 0.0
    %87 = vmatprep.subr.mxu0 0.0
    %88 = vmatpush1.msra.mxu0 0.0
    %89 = vmatprep.subr.mxu0 0.0
    %90 = vmatpush1.msra.mxu0 0.0
    %91 = vmatprep.subr.mxu0 0.0
    %92 = vmatpush1.msra.mxu0 0.0
    %93 = vmatprep.subr.mxu0 0.0
    %94 = vmatpush1.msra.mxu0 0.0
    %95 = vmatprep.subr.mxu0 0.0
    %96 = vmatpush1.msra.mxu0 0.0
    %97 = vmatprep.subr.mxu0 0.0
    %98 = vmatpush1.msra.mxu0 0.0
    %99 = vmatprep.subr.mxu0 0.0
    %100 = vmatpush1.msra.mxu0 0.0
    %101 = vmatprep.subr.mxu0 0.0
    %102 = vmatpush1.msra.mxu0 0.0
    %103 = vmatprep.subr.mxu0 0.0
    %104 = vmatpush1.msra.mxu0 0.0
    %105 = vmatprep.subr.mxu0 0.0
    %106 = vmatpush1.msra.mxu0 0.0
    %107 = vmatprep.subr.mxu0 0.0
    %108 = vmatpush1.msra.mxu0 0.0
    %109 = vmatprep.subr.mxu0 0.0
    %110 = vmatpush1.msra.mxu0 0.0
    %111 = vmatprep.subr.mxu0 0.0
    %112 = vmatpush1.msra.mxu0 0.0
    %113 = vmatprep.subr.mxu0 0.0
    %114 = vmatpush1.msra.mxu0 0.0
    %115 = vmatprep.subr.mxu0 0.0
    %116 = vmatpush1.msra.mxu0 0.0
    %117 = vmatprep.subr.mxu0 0.0
    %118 = vmatpush1.msra.mxu0 0.0
    %119 = vmatprep.subr.mxu0 0.0
    %120 = vmatpush1.msra.mxu0 0.0
    %121 = vmatprep.mubr.f32.mxu0 0.0
    %122 = vmatmul.mubr.f32.gmra.mrb[0].mxu0 %v55
    %v123 = vpop.f32.mrb[0].mxu0
    %v124 = vadd.f32 %v51, %v123
    %v125 = vpop.f32.mrb[0].mxu0
    %126 = vdwg.mxu0
    %127 = vst [vmem:[#allocation7] sm:$0xff] %v124
    // Predicated region
    $region22: #{tpu_custom_call.1} parent=1 // pred_check
      _
    $region23: #{tpu_custom_call.1} parent=1 // pred_check_branch
      %129 = sbr.rel (0) target = $region25
    $region24: #{tpu_custom_call.1} parent=1 // pred_region
      %s131 = ssub.s32 128, 128
      %132 = vsyncadd [#allocation4], %s131
      %s134 = sshll.u32 [#allocation7], 4
      %s135 = int_to_ptr.vmem [resolvable:$true] %s134
      %137 = dma.vmem_to_hbm [thread:$0]  %s135, 128, %s3, [#allocation4]
    $region25: #{tpu_custom_call.1} parent=1 // pred_fallthru
      _
    // Predicated region
    $region26: #{tpu_custom_call.1} parent=1 // pred_check
      _
    $region27: #{tpu_custom_call.1} parent=1 // pred_check_branch
      %139 = sbr.rel (0) target = $region29
    $region28: #{tpu_custom_call.1} parent=1 // pred_region
      %140 = dma.done [#allocation4], 128
    $region29: #{tpu_custom_call.1} parent=1 // pred_fallthru
      _
    %141 = vsyncpa [#allocation3], 1
    %142 = vsyncpa [#allocation6], 1
    %143 = vsyncpa [#allocation4], 1

</llo_original>
